<compile_context>
chip_gen: v5e
topology: v5e:2x2
jax: 0.10.0
libtpu: 0.0.40
codegen_flags: <defaults>
</compile_context>

<pallas_src>
import math

import jax
import jax.numpy as jnp
from jax import lax
from jax.experimental import pallas as pl
from jax.experimental.pallas import tpu as pltpu


def _round_up(x, m):
    return ((x + m - 1) // m) * m


def _largest_aligned_divisor(n, cap, align=128):
    """Largest t <= cap with t % align == 0 and n % t == 0 (n is a multiple of align)."""
    t = (max(min(cap, n), align) // align) * align
    while t > align:
        if n % t == 0:
            return t
        t -= align
    return align


def _default_config():
    """Per-generation tile sizes / scoped-VMEM budget."""
    try:
        vmem_cap = int(pltpu.get_tpu_info().vmem_capacity_bytes)
    except Exception:
        vmem_cap = 64 * 1024 * 1024  # conservative (v7x-sized)
    if vmem_cap >= 100 * 1024 * 1024:
        # v5e / v6e: 128 MiB VMEM -> big double-buffered adjacency strips.
        return dict(row_tile=1024, col_tile=2048, col_tile_pass1=4096,
                    vmem_limit_bytes=96 * 1024 * 1024)
    # v7x: 64 MiB VMEM per TensorCore -> cap tiles and the scoped limit.
    return dict(row_tile=512, col_tile=1024, col_tile_pass1=2048,
                vmem_limit_bytes=48 * 1024 * 1024)


def _degree_support_kernel(adj_ref, x_ref, w_ref, ssup_ref, d_ref, rs_ref):
    # adj_ref:  (1, TM, TK1)    adjacency tile (rows m-strip, cols k-strip)
    # x_ref:    (1, TM, F_in)   node features for this row strip (resident over k)
    # w_ref:    (F_in, F_pad)   weights (resident)
    # ssup_ref: (1, TM, F_pad)  output: d * (x @ W)
    # d_ref:    (1, TM, 1)      output: D^{-1/2} for this row strip
    # rs_ref:   (TM, 1) f32     scratch: running row-sum of A_hat
    k = pl.program_id(2)

    @pl.when(k == 0)
    def _():
        # "+ I" self-loop contributes exactly 1.0 to every row sum.
        rs_ref[...] = jnp.ones_like(rs_ref)

    # f32 accumulation of the row sums regardless of adjacency storage dtype.
    rs_ref[...] += jnp.sum(adj_ref[0].astype(jnp.float32), axis=1, keepdims=True)

    @pl.when(k == pl.num_programs(2) - 1)
    def _():
        # d = rowsum ** -0.5 with inf -> 0, computed as a single EUP rsqrt.
        d = lax.rsqrt(rs_ref[...])
        d = jnp.where(jnp.isinf(d), jnp.zeros_like(d), d)
        d_ref[0] = d
        # support = x @ W, computed once per row strip (not per contraction tile).
        support = jnp.dot(x_ref[0], w_ref[...], preferred_element_type=jnp.float32)
        ssup_ref[0] = (d * support).astype(ssup_ref.dtype)


def _aggregate_kernel(adj_ref, ssup_k_ref, ssup_m_ref, d_ref, b_ref, o_ref, acc_ref):
    # adj_ref:    (1, TM, TK)     adjacency tile
    # ssup_k_ref: (1, TK, F_pad)  d-scaled support, contraction columns
    # ssup_m_ref: (1, TM, F_pad)  d-scaled support, this row strip (self-loop term)
    # d_ref:      (1, TM, 1)      D^{-1/2} for this row strip
    # b_ref:      (1, F_pad)      bias
    # o_ref:      (1, TM, F_pad)  output tile
    # acc_ref:    (TM, F_pad) f32 accumulator scratch
    k = pl.program_id(2)

    @pl.when(k == 0)
    def _():
        # A_hat @ s = adj @ s + s : initialize with the identity (self-loop) term.
        acc_ref[...] = ssup_m_ref[0].astype(jnp.float32)

    a = adj_ref[0]
    if a.dtype != jnp.float32 and a.dtype != jnp.bfloat16:
        # int8 / fp8 adjacency stored in HBM (4x fewer bytes): upcast on the VPU,
        # fully hidden under the adjacency DMA.  Never relies on an int MXU path
        # (v7x has none).
        a = a.astype(jnp.bfloat16)
    acc_ref[...] += jnp.dot(a, ssup_k_ref[0], preferred_element_type=jnp.float32)

    @pl.when(k == pl.num_programs(2) - 1)
    def _():
        o_ref[0] = (d_ref[0] * acc_ref[...] + b_ref[...]).astype(o_ref.dtype)


def graph_conv_forward(x, adj, weight, bias, *,
                       row_tile=None, col_tile=None, col_tile_pass1=None,
                       vmem_limit_bytes=None, out_dtype=None):
    """GCN forward. x: [B,N,F_in], adj: [B,N,N], weight: [F_in,F_out], bias: [F_out].

    The adjacency is used in the dtype the caller supplies:
      * float32  -> exact (matches the PyTorch reference),
      * bfloat16 -> half the adjacency HBM traffic (recommended default for perf),
      * int8/fp8 -> quarter traffic; upcast to bf16 in-kernel.
    The wrapper never casts adj itself, so there is no hidden N^2 read+write.
    """
    B, N, F_in = x.shape
    F_out = weight.shape[1]
    out_dtype = x.dtype if out_dtype is None else out_dtype

    exact = adj.dtype == jnp.float32
    ssup_dtype = jnp.float32 if exact else jnp.bfloat16

    cfg = _default_config()
    row_tile = cfg["row_tile"] if row_tile is None else row_tile
    col_tile = cfg["col_tile"] if col_tile is None else col_tile
    col_tile_pass1 = cfg["col_tile_pass1"] if col_tile_pass1 is None else col_tile_pass1
    vmem_limit_bytes = (cfg["vmem_limit_bytes"] if vmem_limit_bytes is None
                        else vmem_limit_bytes)

    # ---- feature padding: lane-dense ssup/out stores + full MXU output columns.
    F_pad = _round_up(F_out, 128)
    if F_pad != F_out:
        weight = jnp.pad(weight, ((0, 0), (0, F_pad - F_out)))
        bias = jnp.pad(bias, (0, F_pad - F_out))
    weight = weight.astype(x.dtype)
    bias_2d = bias.reshape(1, F_pad).astype(jnp.float32)

    # ---- node padding: every tile stays 128-aligned (valid for f32/bf16/int8/fp8
    # sublane packing); no "full-extent fallback" tile can blow the VMEM budget.
    N_pad = _round_up(N, 128)
    if N_pad != N:
        x = jnp.pad(x, ((0, 0), (0, N_pad - N), (0, 0)))
        adj = jnp.pad(adj, ((0, 0), (0, N_pad - N), (0, N_pad - N)))

    TM = _largest_aligned_divisor(N_pad, row_tile)           # output-row strip
    TK = _largest_aligned_divisor(N_pad, col_tile)            # pass-2 contraction strip
    TK1 = _largest_aligned_divisor(N_pad, col_tile_pass1)     # pass-1 streaming strip

    cparams = pltpu.CompilerParams(
        dimension_semantics=("parallel", "parallel", "arbitrary"),
        vmem_limit_bytes=vmem_limit_bytes)
    # TODO(synk): on v7x with tiny batch, verify both TensorCores are used; if not,
    # mark the m axis pltpu.CORE_PARALLEL (or use core_map) to shard row strips.

    # --- Pass 1: full-row degrees + d-scaled support (pure streaming, wide TK1) ---
    ssup, d = pl.pallas_call(
        _degree_support_kernel,
        out_shape=(jax.ShapeDtypeStruct((B, N_pad, F_pad), ssup_dtype),
                   jax.ShapeDtypeStruct((B, N_pad, 1), jnp.float32)),
        grid_spec=pltpu.PrefetchScalarGridSpec(
            num_scalar_prefetch=0,
            grid=(B, N_pad // TM, N_pad // TK1),
            in_specs=[
                pl.BlockSpec((1, TM, TK1), lambda b, m, k: (b, m, k)),     # adj
                pl.BlockSpec((1, TM, F_in), lambda b, m, k: (b, m, 0)),    # x
                pl.BlockSpec((F_in, F_pad), lambda b, m, k: (0, 0)),       # W
            ],
            out_specs=[
                pl.BlockSpec((1, TM, F_pad), lambda b, m, k: (b, m, 0)),   # ssup
                pl.BlockSpec((1, TM, 1), lambda b, m, k: (b, m, 0)),       # d
            ],
            scratch_shapes=[pltpu.VMEM((TM, 1), jnp.float32)],
        ),
        compiler_params=cparams,
    )(adj, x, weight)

    # --- Pass 2: out = d * (adj @ ssup + ssup) + bias --------------------------
    out = pl.pallas_call(
        _aggregate_kernel,
        out_shape=jax.ShapeDtypeStruct((B, N_pad, F_pad), out_dtype),
        grid_spec=pltpu.PrefetchScalarGridSpec(
            num_scalar_prefetch=0,
            grid=(B, N_pad // TM, N_pad // TK),
            in_specs=[
                pl.BlockSpec((1, TM, TK), lambda b, m, k: (b, m, k)),      # adj
                pl.BlockSpec((1, TK, F_pad), lambda b, m, k: (b, k, 0)),   # ssup (cols)
                pl.BlockSpec((1, TM, F_pad), lambda b, m, k: (b, m, 0)),   # ssup (rows)
                pl.BlockSpec((1, TM, 1), lambda b, m, k: (b, m, 0)),       # d (rows)
                pl.BlockSpec((1, F_pad), lambda b, m, k: (0, 0)),          # bias
            ],
            out_specs=pl.BlockSpec((1, TM, F_pad), lambda b, m, k: (b, m, 0)),
            scratch_shapes=[pltpu.VMEM((TM, F_pad), jnp.float32)],
        ),
        compiler_params=cparams,
    )(adj, ssup, ssup, d, bias_2d)

    return out[:, :N, :F_out]


def graph_conv_reference(x, adj, weight, bias):
    """Pure-JAX reference mirroring the PyTorch forward (f32-exact matmuls)."""
    N = adj.shape[1]
    eye = jnp.eye(N, dtype=adj.dtype)[None]
    a_hat = adj + eye
    rowsum = a_hat.sum(axis=2)
    dd = rowsum ** -0.5
    dd = jnp.where(jnp.isinf(dd), 0.0, dd)
    adj_norm = dd[:, :, None] * a_hat * dd[:, None, :]
    support = jnp.einsum("bnf,fo->bno", x, weight,
                         precision=jax.lax.Precision.HIGHEST)
    return jnp.einsum("bnm,bmo->bno", adj_norm, support,
                      precision=jax.lax.Precision.HIGHEST) + bias


if __name__ == "__main__":
    B, N, F_in, F_out = 2, 16, 8, 32

    key = jax.random.PRNGKey(0)
    kx, kadj, kw, kx2, kadj2 = jax.random.split(key, 5)

    # Deterministic parameter init matching the module's __init__:
    # weight: Xavier-uniform [F_in, F_out], bias: zeros [F_out].
    bound = math.sqrt(6.0 / (F_in + F_out))
    weight = jax.random.uniform(kw, (F_in, F_out), jnp.float32,
                                minval=-bound, maxval=bound)
    bias = jnp.zeros((F_out,), jnp.float32)

    # Case 1: exact f32 adjacency path, tiny graph (padded internally to one 128-tile).
    x = jax.random.normal(kx, (B, N, F_in), jnp.float32)
    adj = jax.random.uniform(kadj, (B, N, N), jnp.float32)
    out = jax.block_until_ready(graph_conv_forward(x, adj, weight, bias))
    ref = graph_conv_reference(x, adj, weight, bias)
    assert out.shape == (B, N, F_out)
    assert jnp.allclose(out, ref, atol=1e-4, rtol=1e-4), \
        float(jnp.max(jnp.abs(out - ref)))

    # Case 2: bf16 adjacency fast path (caller-supplied, no wrapper cast) and a
    # multi-step contraction grid (pass-2 grid = (B, 4, 4), pass-1 = (B, 4, 2)).
    N2 = 512
    x2 = jax.random.normal(kx2, (B, N2, F_in), jnp.float32)
    adj2 = jax.random.uniform(kadj2, (B, N2, N2), jnp.float32).astype(jnp.bfloat16)
    out2 = jax.block_until_ready(
        graph_conv_forward(x2, adj2, weight, bias,
                           row_tile=128, col_tile=128, col_tile_pass1=256))
    ref2 = graph_conv_reference(x2, adj2.astype(jnp.float32), weight, bias)
    assert jnp.allclose(out2, ref2, atol=2e-2, rtol=2e-2), \
        float(jnp.max(jnp.abs(out2 - ref2)))

    print("KERNEL_OK")
</pallas_src>

<mosaic_0001>
module attributes {stable_mosaic.version = 11 : i64} {
  func.func @_degree_support_kernel(%arg0: i32, %arg1: i32, %arg2: i32, %arg3: memref<1x128x128xf32, #tpu.memory_space<vmem>>, %arg4: memref<1x128x8xf32, #tpu.memory_space<vmem>>, %arg5: memref<8x128xf32, #tpu.memory_space<vmem>>, %arg6: memref<1x128x128xf32, #tpu.memory_space<vmem>>, %arg7: memref<1x128x1xf32, #tpu.memory_space<vmem>>, %arg8: memref<128x1xf32, #tpu.memory_space<vmem>>) attributes {dimension_semantics = [#tpu.dimension_semantics<parallel>, #tpu.dimension_semantics<parallel>, #tpu.dimension_semantics<arbitrary>], iteration_bounds = array<i64: 2, 1, 1>, scalar_prefetch = 0 : i64, scratch_operands = 1 : i64, tpu.core_type = #tpu.core_type<tc>, window_params = [{transform_indices = @transform_0, window_bounds = array<i64: 1, 128, 128>}, {transform_indices = @transform_1, window_bounds = array<i64: 1, 128, 8>}, {pipeline_mode = #tpu.pipeline_mode<synchronous>, transform_indices = @transform_2, window_bounds = array<i64: 8, 128>}, {transform_indices = @transform_3, window_bounds = array<i64: 1, 128, 128>}, {transform_indices = @transform_4, window_bounds = array<i64: 1, 128, 1>}]} {
    %c0_i32 = arith.constant 0 : i32
    %0 = arith.cmpi eq, %arg2, %c0_i32 : i32
    %1 = arith.extui %0 : i1 to i32
    %c0_i32_0 = arith.constant 0 : i32
    %2 = arith.cmpi ne, %1, %c0_i32_0 : i32
    scf.if %2 {
      %cst_9 = arith.constant 1.000000e+00 : f32
      %13 = vector.broadcast %cst_9 : f32 to vector<128x1xf32>
      %c0_10 = arith.constant 0 : index
      %c0_11 = arith.constant 0 : index
      %14 = vector.load %arg8[%c0_10, %c0_11] : memref<128x1xf32, #tpu.memory_space<vmem>>, vector<128x1xf32>
      tpu.vector_store %arg8[%c0_10, %c0_11], %13 {strides = array<i32>} : memref<128x1xf32, #tpu.memory_space<vmem>>, vector<128x1xf32>,
    } else {
    }
    %c0 = arith.constant 0 : index
    %c0_1 = arith.constant 0 : index
    %3 = vector.load %arg8[%c0, %c0_1] : memref<128x1xf32, #tpu.memory_space<vmem>>, vector<128x1xf32>
    %c0_2 = arith.constant 0 : index
    %c0_3 = arith.constant 0 : index
    %c0_4 = arith.constant 0 : index
    %4 = vector.load %arg3[%c0_2, %c0_3, %c0_4] : memref<1x128x128xf32, #tpu.memory_space<vmem>>, vector<1x128x128xf32>
    %5 = vector.shape_cast %4 : vector<1x128x128xf32> to vector<128x128xf32>
    %cst = arith.constant dense<0.000000e+00> : vector<128xf32>
    %6 = vector.multi_reduction <add>, %5, %cst [1] : vector<128x128xf32> to vector<128xf32>
    %7 = vector.shape_cast %6 : vector<128xf32> to vector<128x1xf32>
    %8 = arith.addf %3, %7 : vector<128x1xf32>
    %c0_5 = arith.constant 0 : index
    %c0_6 = arith.constant 0 : index
    %9 = vector.load %arg8[%c0_5, %c0_6] : memref<128x1xf32, #tpu.memory_space<vmem>>, vector<128x1xf32>
    tpu.vector_store %arg8[%c0_5, %c0_6], %8 {strides = array<i32>} : memref<128x1xf32, #tpu.memory_space<vmem>>, vector<128x1xf32>,
    %c0_i32_7 = arith.constant 0 : i32
    %10 = arith.cmpi eq, %arg2, %c0_i32_7 : i32
    %11 = arith.extui %10 : i1 to i32
    %c0_i32_8 = arith.constant 0 : i32
    %12 = arith.cmpi ne, %11, %c0_i32_8 : i32
    scf.if %12 {
      %c0_9 = arith.constant 0 : index
      %c0_10 = arith.constant 0 : index
      %13 = vector.load %arg8[%c0_9, %c0_10] : memref<128x1xf32, #tpu.memory_space<vmem>>, vector<128x1xf32>
      %14 = math.rsqrt %13 : vector<128x1xf32>
      %15 = math.absf %14 : vector<128x1xf32>
      %cst_11 = arith.constant 0x7F800000 : f32
      %16 = vector.broadcast %cst_11 : f32 to vector<128x1xf32>
      %17 = arith.cmpf oeq, %15, %16 : vector<128x1xf32>
      %cst_12 = arith.constant 0.000000e+00 : f32
      %18 = vector.broadcast %cst_12 : f32 to vector<128x1xf32>
      %19 = arith.select %17, %18, %14 : vector<128x1xi1>, vector<128x1xf32>
      %c0_13 = arith.constant 0 : index
      %c0_14 = arith.constant 0 : index
      %c0_15 = arith.constant 0 : index
      %20 = vector.load %arg7[%c0_13, %c0_14, %c0_15] : memref<1x128x1xf32, #tpu.memory_space<vmem>>, vector<1x128x1xf32>
      %21 = vector.shape_cast %20 : vector<1x128x1xf32> to vector<128x1xf32>
      %22 = vector.shape_cast %19 : vector<128x1xf32> to vector<1x128x1xf32>
      tpu.vector_store %arg7[%c0_13, %c0_14, %c0_15], %22 {strides = array<i32>} : memref<1x128x1xf32, #tpu.memory_space<vmem>>, vector<1x128x1xf32>,
      %c0_16 = arith.constant 0 : index
      %c0_17 = arith.constant 0 : index
      %c0_18 = arith.constant 0 : index
      %23 = vector.load %arg4[%c0_16, %c0_17, %c0_18] : memref<1x128x8xf32, #tpu.memory_space<vmem>>, vector<1x128x8xf32>
      %24 = vector.shape_cast %23 : vector<1x128x8xf32> to vector<128x8xf32>
      %c0_19 = arith.constant 0 : index
      %c0_20 = arith.constant 0 : index
      %25 = vector.load %arg5[%c0_19, %c0_20] : memref<8x128xf32, #tpu.memory_space<vmem>>, vector<8x128xf32>
      %cst_21 = arith.constant dense<0.000000e+00> : vector<128x128xf32>
      %26 = tpu.matmul %24, %25, %cst_21 {dimension_numbers = #tpu.dot_dimension_numbers<[1], [0], [0], [1], [0, 0, 1, 1], [], []>} : vector<128x8xf32>, vector<8x128xf32>, vector<128x128xf32> -> vector<128x128xf32>
      %27 = vector.broadcast %19 : vector<128x1xf32> to vector<128x128xf32>
      %28 = arith.mulf %27, %26 : vector<128x128xf32>
      %c0_22 = arith.constant 0 : index
      %c0_23 = arith.constant 0 : index
      %c0_24 = arith.constant 0 : index
      %29 = vector.load %arg6[%c0_22, %c0_23, %c0_24] : memref<1x128x128xf32, #tpu.memory_space<vmem>>, vector<1x128x128xf32>
      %30 = vector.shape_cast %29 : vector<1x128x128xf32> to vector<128x128xf32>
      %31 = vector.shape_cast %28 : vector<128x128xf32> to vector<1x128x128xf32>
      tpu.vector_store %arg6[%c0_22, %c0_23, %c0_24], %31 {strides = array<i32>} : memref<1x128x128xf32, #tpu.memory_space<vmem>>, vector<1x128x128xf32>,
    } else {
    }
    return
  }
  func.func @transform_0(%arg0: i32, %arg1: i32, %arg2: i32) -> (i32, i32, i32) {
    %c0_i32 = arith.constant 0 : i32
    return %arg0, %arg1, %arg2 : i32, i32, i32
  }
  func.func @transform_1(%arg0: i32, %arg1: i32, %arg2: i32) -> (i32, i32, i32) {
    %c0_i32 = arith.constant 0 : i32
    %c0_i32_0 = arith.constant 0 : i32
    return %arg0, %arg1, %c0_i32 : i32, i32, i32
  }
  func.func @transform_2(%arg0: i32, %arg1: i32, %arg2: i32) -> (i32, i32) {
    %c0_i32 = arith.constant 0 : i32
    %c0_i32_0 = arith.constant 0 : i32
    %c0_i32_1 = arith.constant 0 : i32
    return %c0_i32, %c0_i32_0 : i32, i32
  }
  func.func @transform_3(%arg0: i32, %arg1: i32, %arg2: i32) -> (i32, i32, i32) {
    %c0_i32 = arith.constant 0 : i32
    %c0_i32_0 = arith.constant 0 : i32
    return %arg0, %arg1, %c0_i32 : i32, i32, i32
  }
  func.func @transform_4(%arg0: i32, %arg1: i32, %arg2: i32) -> (i32, i32, i32) {
    %c0_i32 = arith.constant 0 : i32
    %c0_i32_0 = arith.constant 0 : i32
    return %arg0, %arg1, %c0_i32 : i32, i32, i32
  }
}

</mosaic_0001>

<llo_original>
// kernel: tpu_custom_call.1
$region0: #{tpu_custom_call.1}
  #allocation0 [shape = 'u32[]', space=smem, size = 0x4, offset = 0x4, fixed_abs, tag = 'smem constant byte address 0x4 - core index']
  #allocation1 [shape = 'u32[72,128]{1,0:T(1,128)}', space=vmem, size = 0x9000, scoped, tag = 'internal scratch']
  #allocation2 [shape = 'f32[128,1]{1,0:T(8,128)}', space=vmem, size = 0x10000, scoped, tag = 'scratch operand']
  %s0 = inlined_call_operand.vmem [shape: f32[2,128,128], index: 0, kind: input, shape index: {}]
  %s1 = inlined_call_operand.vmem [shape: f32[2,128,8], index: 1, kind: input, shape index: {}]
  %s2 = inlined_call_operand.vmem [shape: f32[8,128], index: 2, kind: input, shape index: {}]
  %s3 = inlined_call_operand.hbm [shape: f32[2,128,128], index: 3, kind: output, shape index: {0}]
  %s4 = inlined_call_operand.vmem [shape: f32[2,128,1], index: 4, kind: output, shape index: {1}]
  %5 = xla_tuple %s3, %s4
  %s6 = sld [smem:[#allocation0]]
  $region61: #{tpu_custom_call.1} parent=0
    _
  %s8 = ssub.s32 1, %s6
  %s9 = scalar_select 0, %s8, %s6
  $region1: #{tpu_custom_call.1} parent=0
    #allocation3 [shape = 'u8[131072]{0}', space=vmem, size = 0x20000, scoped, tag = 'output window, operand 0']
    #allocation4 [shape = 's32[2]{0}', space=sflag, size = 0x8, scoped, tag = 'scoped memory for tpu_custom_call.1']
    %10 = vsyncpa [#allocation4], 0
    %s11 = scalar_lea.sflag [#allocation4], 1
    %12 = vsyncpa %s11, 0
    loop: start=0, step=1, limit=4
    $region2: #{tpu_custom_call.1} parent=1 // loop_pre_header
      _
    $region3: #{tpu_custom_call.1} parent=1 // loop_header
      %s14 = sphi 0, %s18
      %p15 = scmp.ge.s32.totalorder %s14, 4
      %s21 = sphi 0, %s40
      %s22 = sphi 0, %s36
      %s23 = sphi 0, %s32
      %s24 = sphi 0, %s21
      %s25 = sphi 0, %s22
      %s26 = sphi 0, %s23
      %s27 = sphi 0, %s24
      %s28 = sphi 0, %s25
      %s29 = sphi 0, %s26
      %s47 = sphi 0, %s49
      %s50 = sphi 0, %s47
      %s51 = sphi 0, %s50
      %s67 = sphi 0, %s51
      %s75 = sphi 0, %s77
      %s78 = sphi 0, %s75
      %s79 = sphi 0, %s78
      %s95 = sphi 0, %s79
      %s99 = sphi 0, %s99
      %s101 = sphi 0, %s99
      %s102 = sphi 0, %s101
      %s116 = sphi 0, %s102
      %s124 = sphi 0, %s126
      %s127 = sphi 0, %s124
      %s128 = sphi 0, %s127
      %s144 = sphi 0, %s128
      %s152 = sphi 0, %s154
      %s155 = sphi 0, %s152
      %s156 = sphi 0, %s155
      %s172 = sphi 0, %s156
    $region4: #{tpu_custom_call.1} parent=1 // loop_header_branch
      %17 = sbr.rel (%p15) target = $region8
    $region5: #{tpu_custom_call.1} parent=1 // loop_body
      %s19 = ssub.s32 %s14, 1
      %s20 = ssub.s32 %s14, 2
      %s30 = sadd.s32 1, %s23
      %p31 = scmp.ge.s32.totalorder %s30, 1
      %s32 = scalar_select %p31, 0, %s30
      %s33 = sadd.s32 1, %s22
      %s34 = scalar_select %p31, %s33, %s22
      %p35 = scmp.ge.s32.totalorder %s34, 1
      %s36 = scalar_select %p35, 0, %s34
      %s37 = sadd.s32 1, %s21
      %s38 = scalar_select %p35, %s37, %s21
      %p39 = scmp.ge.s32.totalorder %s38, 2
      %s40 = scalar_select %p39, 0, %s38
      %s41 = ssub.s32 %s21, %s40
      %s42 = ssub.s32 %s22, %s36
      %s43 = sor.u32 %s41, %s42
      %s44 = ssub.s32 %s23, %s32
      %s45 = sor.u32 %s43, %s44
      %p46 = scmp.eq.s32.totalorder %s45, 0
      %s48 = sadd.s32 %s47, 1
      %s49 = scalar_select %p46, %s47, %s48
      %p52 = pneg %p46
      %p53 = scmp.eq.s32.totalorder %s14, 1
      %p54 = por %p52, %p53
      %p55 = scmp.ne.s32.totalorder %s47, %s50
      %p56 = scmp.eq.s32.totalorder %s14, 0
      %p57 = por %p55, %p56
      %p58 = scmp.ne.s32.totalorder %s47, %s50
      %p59 = scmp.eq.s32.totalorder %s19, 1
      %p60 = por %p58, %p59
      %p61 = scmp.ne.s32.totalorder %s50, %s51
      %p62 = scmp.eq.s32.totalorder %s19, 0
      %p63 = por %p61, %p62
      %p64 = scmp.ne.s32.totalorder %s50, %s51
      %p65 = scmp.eq.s32.totalorder %s20, 1
      %p66 = por %p64, %p65
      %p68 = scmp.ne.s32.totalorder %s51, %s67
      %p69 = scmp.eq.s32.totalorder %s20, 0
      %p70 = por %p68, %p69
      %s71 = ssub.s32 %s21, %s40
      %s72 = ssub.s32 %s22, %s36
      %s73 = sor.u32 %s71, %s72
      %p74 = scmp.eq.s32.totalorder %s73, 0
      %s76 = sadd.s32 %s75, 1
      %s77 = scalar_select %p74, %s75, %s76
      %p80 = pneg %p74
      %p81 = scmp.eq.s32.totalorder %s14, 1
      %p82 = por %p80, %p81
      %p83 = scmp.ne.s32.totalorder %s75, %s78
      %p84 = scmp.eq.s32.totalorder %s14, 0
      %p85 = por %p83, %p84
      %p86 = scmp.ne.s32.totalorder %s75, %s78
      %p87 = scmp.eq.s32.totalorder %s19, 1
      %p88 = por %p86, %p87
      %p89 = scmp.ne.s32.totalorder %s78, %s79
      %p90 = scmp.eq.s32.totalorder %s19, 0
      %p91 = por %p89, %p90
      %p92 = scmp.ne.s32.totalorder %s78, %s79
      %p93 = scmp.eq.s32.totalorder %s20, 1
      %p94 = por %p92, %p93
      %p96 = scmp.ne.s32.totalorder %s79, %s95
      %p97 = scmp.eq.s32.totalorder %s20, 0
      %p98 = por %p96, %p97
      %s100 = sadd.s32 %s99, 1
      %p103 = scmp.eq.s32.totalorder %s14, 1
      %p104 = scmp.ne.s32.totalorder %s99, %s101
      %p105 = scmp.eq.s32.totalorder %s14, 0
      %p106 = por %p104, %p105
      %p107 = scmp.ne.s32.totalorder %s99, %s101
      %p108 = scmp.eq.s32.totalorder %s19, 1
      %p109 = por %p107, %p108
      %p110 = scmp.ne.s32.totalorder %s101, %s102
      %p111 = scmp.eq.s32.totalorder %s19, 0
      %p112 = por %p110, %p111
      %p113 = scmp.ne.s32.totalorder %s101, %s102
      %p114 = scmp.eq.s32.totalorder %s20, 1
      %p115 = por %p113, %p114
      %p117 = scmp.ne.s32.totalorder %s102, %s116
      %p118 = scmp.eq.s32.totalorder %s20, 0
      %p119 = por %p117, %p118
      %s120 = ssub.s32 %s21, %s40
      %s121 = ssub.s32 %s22, %s36
      %s122 = sor.u32 %s120, %s121
      %p123 = scmp.eq.s32.totalorder %s122, 0
      %s125 = sadd.s32 %s124, 1
      %s126 = scalar_select %p123, %s124, %s125
      %p129 = pneg %p123
      %p130 = scmp.eq.s32.totalorder %s14, 1
      %p131 = por %p129, %p130
      %p132 = scmp.ne.s32.totalorder %s124, %s127
      %p133 = scmp.eq.s32.totalorder %s14, 0
      %p134 = por %p132, %p133
      %p135 = scmp.ne.s32.totalorder %s124, %s127
      %p136 = scmp.eq.s32.totalorder %s19, 1
      %p137 = por %p135, %p136
      %p138 = scmp.ne.s32.totalorder %s127, %s128
      %p139 = scmp.eq.s32.totalorder %s19, 0
      %p140 = por %p138, %p139
      %p141 = scmp.ne.s32.totalorder %s127, %s128
      %p142 = scmp.eq.s32.totalorder %s20, 1
      %p143 = por %p141, %p142
      %p145 = scmp.ne.s32.totalorder %s128, %s144
      %p146 = scmp.eq.s32.totalorder %s20, 0
      %p147 = por %p145, %p146
      %s148 = ssub.s32 %s21, %s40
      %s149 = ssub.s32 %s22, %s36
      %s150 = sor.u32 %s148, %s149
      %p151 = scmp.eq.s32.totalorder %s150, 0
      %s153 = sadd.s32 %s152, 1
      %s154 = scalar_select %p151, %s152, %s153
      %p157 = pneg %p151
      %p158 = scmp.eq.s32.totalorder %s14, 1
      %p159 = por %p157, %p158
      %p160 = scmp.ne.s32.totalorder %s152, %s155
      %p161 = scmp.eq.s32.totalorder %s14, 0
      %p162 = por %p160, %p161
      %p163 = scmp.ne.s32.totalorder %s152, %s155
      %p164 = scmp.eq.s32.totalorder %s19, 1
      %p165 = por %p163, %p164
      %p166 = scmp.ne.s32.totalorder %s155, %s156
      %p167 = scmp.eq.s32.totalorder %s19, 0
      %p168 = por %p166, %p167
      %p169 = scmp.ne.s32.totalorder %s155, %s156
      %p170 = scmp.eq.s32.totalorder %s20, 1
      %p171 = por %p169, %p170
      %p173 = scmp.ne.s32.totalorder %s156, %s172
      %p174 = scmp.eq.s32.totalorder %s20, 0
      %p175 = por %p173, %p174
      %p176 = scmp.le.s32.totalorder 1, %s14
      %p177 = scmp.lt.s32.totalorder %s14, 3
      %p178 = pnand %p176, %p177
      %p179 = pneg %p178
      // Predicated region
      $region9: #{tpu_custom_call.1} parent=5 // pred_check
        _
      $region10: #{tpu_custom_call.1} parent=5 // pred_check_branch
        %181 = sbr.rel (%p178) target = $region12
      $region11: #{tpu_custom_call.1} parent=5 // pred_region
        %s182 = ssub.s32 %s14, 1
        // Predicated region
        $region13: #{tpu_custom_call.1} parent=11 // pred_check
          %p183 = pneg %p112
        $region14: #{tpu_custom_call.1} parent=11 // pred_check_branch
          %185 = sbr.rel (%p183) target = $region16
        $region15: #{tpu_custom_call.1} parent=11 // pred_region
          _
        $region16: #{tpu_custom_call.1} parent=11 // pred_fallthru
          _
      $region12: #{tpu_custom_call.1} parent=5 // pred_fallthru
        _
      %p186 = scmp.lt.s32.totalorder %s14, 2
      // Predicated region
      $region17: #{tpu_custom_call.1} parent=5 // pred_check
        %p187 = pneg %p186
      $region18: #{tpu_custom_call.1} parent=5 // pred_check_branch
        %189 = sbr.rel (%p187) target = $region20
      $region19: #{tpu_custom_call.1} parent=5 // pred_region
        // Predicated region
        $region21: #{tpu_custom_call.1} parent=19 // pred_check
          %p190 = pneg %p57
        $region22: #{tpu_custom_call.1} parent=19 // pred_check_branch
          %192 = sbr.rel (%p190) target = $region24
        $region23: #{tpu_custom_call.1} parent=19 // pred_region
          %s193 = smul.u32 16, %s22
          %p194 = scmp.lt.s32.totalorder %s21, 1
          %s195 = scalar_select %p194, %s21, 1
          %p196 = scmp.lt.s32.totalorder %s193, 15
          %s197 = scalar_select %p196, %s193, 15
          %p198 = scmp.lt.s32.totalorder %s23, 0
          %s199 = scalar_select %p198, %s23, 0
          %s200 = sadd.s32 %s199, %s197
          %s201 = smul.addr %s195, 16
          %s202 = sadd.s32 %s200, %s201
          %s203 = smul.addr %s202, 8
          %s204 = scalar_lea.vmem %s0, %s203
          %s205 = smul.u32 16, %s22
        $region24: #{tpu_custom_call.1} parent=19 // pred_fallthru
          _
        // Predicated region
        $region25: #{tpu_custom_call.1} parent=19 // pred_check
          %p206 = pneg %p85
        $region26: #{tpu_custom_call.1} parent=19 // pred_check_branch
          %208 = sbr.rel (%p206) target = $region28
        $region27: #{tpu_custom_call.1} parent=19 // pred_region
          %s209 = smul.u32 16, %s22
          %p210 = scmp.lt.s32.totalorder %s21, 1
          %s211 = scalar_select %p210, %s21, 1
          %p212 = scmp.lt.s32.totalorder %s209, 15
          %s213 = scalar_select %p212, %s209, 15
          %s214 = smul.addr %s211, 16
          %s215 = sadd.s32 %s213, %s214
          %s216 = smul.addr %s215, 8
          %s217 = scalar_lea.vmem %s1, %s216
          %s218 = smul.u32 16, %s22
        $region28: #{tpu_custom_call.1} parent=19 // pred_fallthru
          _
      $region20: #{tpu_custom_call.1} parent=5 // pred_fallthru
        _
      %p219 = scmp.le.s32.totalorder 1, %s14
      %p220 = scmp.lt.s32.totalorder %s14, 3
      %p221 = pnand %p219, %p220
      %p222 = pneg %p221
      // Predicated region
      $region29: #{tpu_custom_call.1} parent=5 // pred_check
        _
      $region30: #{tpu_custom_call.1} parent=5 // pred_check_branch
        %224 = sbr.rel (%p221) target = $region32
      $region31: #{tpu_custom_call.1} parent=5 // pred_region
        %s225 = ssub.s32 %s14, 1
        %s226 = smul.u32 16, %s25
        %p227 = scmp.lt.s32.totalorder %s24, 1
        %s228 = scalar_select %p227, %s24, 1
        %p229 = scmp.lt.s32.totalorder %s226, 15
        %s230 = scalar_select %p229, %s226, 15
        %p231 = scmp.lt.s32.totalorder %s26, 0
        %s232 = scalar_select %p231, %s26, 0
        %s233 = sadd.s32 %s232, %s230
        %s234 = smul.addr %s228, 16
        %s235 = sadd.s32 %s233, %s234
        %s236 = smul.addr %s235, 8
        %s237 = scalar_lea.vmem %s0, %s236
        %p238 = pneg %p63
        %p239 = pneg %p60
        %s240 = smul.u32 16, %s25
        %p241 = scmp.lt.s32.totalorder %s24, 1
        %s242 = scalar_select %p241, %s24, 1
        %p243 = scmp.lt.s32.totalorder %s240, 15
        %s244 = scalar_select %p243, %s240, 15
        %s245 = smul.addr %s242, 16
        %s246 = sadd.s32 %s244, %s245
        %s247 = smul.addr %s246, 8
        %s248 = scalar_lea.vmem %s1, %s247
        %p249 = pneg %p91
        %p250 = pneg %p88
        %p251 = pneg %p112
        %p252 = pneg %p109
        %p253 = pneg %p140
        %p254 = pneg %p137
        %s255 = sand.u32 %s127, 1
        %s256 = scalar_lea.sflag [#allocation4], %s255
        %s257 = sand.u32 %s127, 1
        %s258 = smul.addr %s257, 128
        %s259 = scalar_lea.vmem [#allocation3], %s258
        %p260 = pneg %p168
        %p261 = pneg %p165
        %s262 = smul.u32 16, %s25
        %p263 = scmp.lt.s32.totalorder %s24, 1
        %s264 = scalar_select %p263, %s24, 1
        %p265 = scmp.lt.s32.totalorder %s262, 15
        %s266 = scalar_select %p265, %s262, 15
        %s267 = smul.addr %s264, 16
        %s268 = sadd.s32 %s266, %s267
        %s269 = smul.addr %s268, 8
        %s270 = scalar_lea.vmem %s4, %s269
        %s271 = smul.u32 16, %s25
        %p272 = scmp.lt.s32.totalorder %s24, 1
        %s273 = scalar_select %p272, %s24, 1
        %p274 = scmp.lt.s32.totalorder %s271, 15
        %s275 = scalar_select %p274, %s271, 15
        %p276 = scmp.lt.s32.totalorder %s26, 0
        %s277 = scalar_select %p276, %s26, 0
        %s278 = sadd.s32 %s277, %s275
        %s279 = smul.addr %s273, 16
        %s280 = sadd.s32 %s278, %s279
        %s281 = smul.addr %s280, 8
        %s282 = scalar_lea.vmem %s0, %s281
        %s283 = smul.u32 16, %s25
        %s284 = smul.u32 16, %s25
        %p285 = scmp.lt.s32.totalorder %s24, 1
        %s286 = scalar_select %p285, %s24, 1
        %p287 = scmp.lt.s32.totalorder %s284, 15
        %s288 = scalar_select %p287, %s284, 15
        %s289 = smul.addr %s286, 16
        %s290 = sadd.s32 %s288, %s289
        %s291 = smul.addr %s290, 8
        %s292 = scalar_lea.vmem %s1, %s291
        %s293 = smul.u32 16, %s25
        %s294 = smul.u32 16, %s25
        %s295 = smul.u32 16, %s25
        %p296 = scmp.lt.s32.totalorder %s24, 1
        %s297 = scalar_select %p296, %s24, 1
        %p298 = scmp.lt.s32.totalorder %s295, 15
        %s299 = scalar_select %p298, %s295, 15
        %s300 = smul.addr %s297, 16
        %s301 = sadd.s32 %s299, %s300
        %s302 = smul.addr %s301, 8
        %s303 = scalar_lea.vmem %s4, %s302
        %s304 = smul.u32 16, %s25
        %p305 = scmp.eq.s32.totalorder %s26, 0
        // Predicated region
        $region33: #{tpu_custom_call.1} parent=31 // pred_check
          %p306 = pneg %p305
        $region34: #{tpu_custom_call.1} parent=31 // pred_check_branch
          %308 = sbr.rel (%p306) target = $region36
        $region35: #{tpu_custom_call.1} parent=31 // pred_region
          %vm309 = vcmask 7168
          %310 = vst.msk [vmem:[#allocation2] sm:$0xff] %vm309, 1.0
          %311 = vst.msk [vmem:[#allocation2 + $0x8] sm:$0xff] %vm309, 1.0
          %312 = vst.msk [vmem:[#allocation2 + $0x10] sm:$0xff] %vm309, 1.0
          %313 = vst.msk [vmem:[#allocation2 + $0x18] sm:$0xff] %vm309, 1.0
          %314 = vst.msk [vmem:[#allocation2 + $0x20] sm:$0xff] %vm309, 1.0
          %315 = vst.msk [vmem:[#allocation2 + $0x28] sm:$0xff] %vm309, 1.0
          %316 = vst.msk [vmem:[#allocation2 + $0x30] sm:$0xff] %vm309, 1.0
          %317 = vst.msk [vmem:[#allocation2 + $0x38] sm:$0xff] %vm309, 1.0
          %318 = vst.msk [vmem:[#allocation2 + $0x40] sm:$0xff] %vm309, 1.0
          %319 = vst.msk [vmem:[#allocation2 + $0x48] sm:$0xff] %vm309, 1.0
          %320 = vst.msk [vmem:[#allocation2 + $0x50] sm:$0xff] %vm309, 1.0
          %321 = vst.msk [vmem:[#allocation2 + $0x58] sm:$0xff] %vm309, 1.0
          %322 = vst.msk [vmem:[#allocation2 + $0x60] sm:$0xff] %vm309, 1.0
          %323 = vst.msk [vmem:[#allocation2 + $0x68] sm:$0xff] %vm309, 1.0
          %324 = vst.msk [vmem:[#allocation2 + $0x70] sm:$0xff] %vm309, 1.0
          %325 = vst.msk [vmem:[#allocation2 + $0x78] sm:$0xff] %vm309, 1.0
        $region36: #{tpu_custom_call.1} parent=31 // pred_fallthru
          _
        %v326 = vld [vmem:[#allocation2] sm:$0xff]
        %v327 = vld [vmem:[#allocation2 + $0x8] sm:$0xff]
        %v328 = vld [vmem:[#allocation2 + $0x10] sm:$0xff]
        %v329 = vld [vmem:[#allocation2 + $0x18] sm:$0xff]
        %v330 = vld [vmem:[#allocation2 + $0x20] sm:$0xff]
        %v331 = vld [vmem:[#allocation2 + $0x28] sm:$0xff]
        %v332 = vld [vmem:[#allocation2 + $0x30] sm:$0xff]
        %v333 = vld [vmem:[#allocation2 + $0x38] sm:$0xff]
        %v334 = vld [vmem:[#allocation2 + $0x40] sm:$0xff]
        %v335 = vld [vmem:[#allocation2 + $0x48] sm:$0xff]
        %v336 = vld [vmem:[#allocation2 + $0x50] sm:$0xff]
        %v337 = vld [vmem:[#allocation2 + $0x58] sm:$0xff]
        %v338 = vld [vmem:[#allocation2 + $0x60] sm:$0xff]
        %v339 = vld [vmem:[#allocation2 + $0x68] sm:$0xff]
        %v340 = vld [vmem:[#allocation2 + $0x70] sm:$0xff]
        %v341 = vld [vmem:[#allocation2 + $0x78] sm:$0xff]
        %v342 = vld [vmem:[%s282] sm:$0xff]
        %v343 = vld [vmem:[%s282 + $0x8] sm:$0xff]
        %v344 = vld [vmem:[%s282 + $0x10] sm:$0xff]
        %v345 = vld [vmem:[%s282 + $0x18] sm:$0xff]
        %v346 = vld [vmem:[%s282 + $0x20] sm:$0xff]
        %v347 = vld [vmem:[%s282 + $0x28] sm:$0xff]
        %v348 = vld [vmem:[%s282 + $0x30] sm:$0xff]
        %v349 = vld [vmem:[%s282 + $0x38] sm:$0xff]
        %v350 = vld [vmem:[%s282 + $0x40] sm:$0xff]
        %v351 = vld [vmem:[%s282 + $0x48] sm:$0xff]
        %v352 = vld [vmem:[%s282 + $0x50] sm:$0xff]
        %v353 = vld [vmem:[%s282 + $0x58] sm:$0xff]
        %v354 = vld [vmem:[%s282 + $0x60] sm:$0xff]
        %v355 = vld [vmem:[%s282 + $0x68] sm:$0xff]
        %v356 = vld [vmem:[%s282 + $0x70] sm:$0xff]
        %v357 = vld [vmem:[%s282 + $0x78] sm:$0xff]
        %358 = vadd.xlane.f32.xlu0 %v342
        %v359 = vpop.xlane.xlu0 %358
        %360 = vadd.xlane.f32.xlu0 %v343
        %v361 = vpop.xlane.xlu0 %360
        %362 = vadd.xlane.f32.xlu0 %v344
        %v363 = vpop.xlane.xlu0 %362
        %364 = vadd.xlane.f32.xlu0 %v345
        %v365 = vpop.xlane.xlu0 %364
        %366 = vadd.xlane.f32.xlu0 %v346
        %v367 = vpop.xlane.xlu0 %366
        %368 = vadd.xlane.f32.xlu0 %v347
        %v369 = vpop.xlane.xlu0 %368
        %370 = vadd.xlane.f32.xlu0 %v348
        %v371 = vpop.xlane.xlu0 %370
        %372 = vadd.xlane.f32.xlu0 %v349
        %v373 = vpop.xlane.xlu0 %372
        %374 = vadd.xlane.f32.xlu0 %v350
        %v375 = vpop.xlane.xlu0 %374
        %376 = vadd.xlane.f32.xlu0 %v351
        %v377 = vpop.xlane.xlu0 %376
        %378 = vadd.xlane.f32.xlu0 %v352
        %v379 = vpop.xlane.xlu0 %378
        %380 = vadd.xlane.f32.xlu0 %v353
        %v381 = vpop.xlane.xlu0 %380
        %382 = vadd.xlane.f32.xlu0 %v354
        %v383 = vpop.xlane.xlu0 %382
        %384 = vadd.xlane.f32.xlu0 %v355
        %v385 = vpop.xlane.xlu0 %384
        %386 = vadd.xlane.f32.xlu0 %v356
        %v387 = vpop.xlane.xlu0 %386
        %388 = vadd.xlane.f32.xlu0 %v357
        %v389 = vpop.xlane.xlu0 %388
        %v390 = vadd.f32 %v326, %v359
        %v391 = vadd.f32 %v327, %v361
        %v392 = vadd.f32 %v328, %v363
        %v393 = vadd.f32 %v329, %v365
        %v394 = vadd.f32 %v330, %v367
        %v395 = vadd.f32 %v331, %v369
        %v396 = vadd.f32 %v332, %v371
        %v397 = vadd.f32 %v333, %v373
        %v398 = vadd.f32 %v334, %v375
        %v399 = vadd.f32 %v335, %v377
        %v400 = vadd.f32 %v336, %v379
        %v401 = vadd.f32 %v337, %v381
        %v402 = vadd.f32 %v338, %v383
        %v403 = vadd.f32 %v339, %v385
        %v404 = vadd.f32 %v340, %v387
        %v405 = vadd.f32 %v341, %v389
        %vm406 = vcmask 7168
        %407 = vst.msk [vmem:[#allocation2] sm:$0xff] %vm406, %v390
        %408 = vst.msk [vmem:[#allocation2 + $0x8] sm:$0xff] %vm406, %v391
        %409 = vst.msk [vmem:[#allocation2 + $0x10] sm:$0xff] %vm406, %v392
        %410 = vst.msk [vmem:[#allocation2 + $0x18] sm:$0xff] %vm406, %v393
        %411 = vst.msk [vmem:[#allocation2 + $0x20] sm:$0xff] %vm406, %v394
        %412 = vst.msk [vmem:[#allocation2 + $0x28] sm:$0xff] %vm406, %v395
        %413 = vst.msk [vmem:[#allocation2 + $0x30] sm:$0xff] %vm406, %v396
        %414 = vst.msk [vmem:[#allocation2 + $0x38] sm:$0xff] %vm406, %v397
        %415 = vst.msk [vmem:[#allocation2 + $0x40] sm:$0xff] %vm406, %v398
        %416 = vst.msk [vmem:[#allocation2 + $0x48] sm:$0xff] %vm406, %v399
        %417 = vst.msk [vmem:[#allocation2 + $0x50] sm:$0xff] %vm406, %v400
        %418 = vst.msk [vmem:[#allocation2 + $0x58] sm:$0xff] %vm406, %v401
        %419 = vst.msk [vmem:[#allocation2 + $0x60] sm:$0xff] %vm406, %v402
        %420 = vst.msk [vmem:[#allocation2 + $0x68] sm:$0xff] %vm406, %v403
        %421 = vst.msk [vmem:[#allocation2 + $0x70] sm:$0xff] %vm406, %v404
        %422 = vst.msk [vmem:[#allocation2 + $0x78] sm:$0xff] %vm406, %v405
        // Predicated region
        $region37: #{tpu_custom_call.1} parent=31 // pred_check
          %p423 = pneg %p305
        $region38: #{tpu_custom_call.1} parent=31 // pred_check_branch
          %425 = sbr.rel (%p423) target = $region40
        $region39: #{tpu_custom_call.1} parent=31 // pred_region
          %v426 = vld [vmem:[#allocation2] sm:$0xff]
          %v427 = vld [vmem:[#allocation2 + $0x8] sm:$0xff]
          %v428 = vld [vmem:[#allocation2 + $0x10] sm:$0xff]
          %v429 = vld [vmem:[#allocation2 + $0x18] sm:$0xff]
          %v430 = vld [vmem:[#allocation2 + $0x20] sm:$0xff]
          %v431 = vld [vmem:[#allocation2 + $0x28] sm:$0xff]
          %v432 = vld [vmem:[#allocation2 + $0x30] sm:$0xff]
          %v433 = vld [vmem:[#allocation2 + $0x38] sm:$0xff]
          %v434 = vld [vmem:[#allocation2 + $0x40] sm:$0xff]
          %v435 = vld [vmem:[#allocation2 + $0x48] sm:$0xff]
          %v436 = vld [vmem:[#allocation2 + $0x50] sm:$0xff]
          %v437 = vld [vmem:[#allocation2 + $0x58] sm:$0xff]
          %v438 = vld [vmem:[#allocation2 + $0x60] sm:$0xff]
          %v439 = vld [vmem:[#allocation2 + $0x68] sm:$0xff]
          %v440 = vld [vmem:[#allocation2 + $0x70] sm:$0xff]
          %v441 = vld [vmem:[#allocation2 + $0x78] sm:$0xff]
          %v442 = vrsqrt.pop %v426
          %v443 = vmul.f32 %v442, %v426
          %v444 = vmul.f32 %v443, %v442
          %v445 = vmul.f32 0.5, %v444
          %v446 = vsub.f32 1.5, %v445
          %v447 = vmul.f32 %v442, %v446
          %vm448 = vweird.f32 %v426
          %vm449 = vweird.f32 %v442
          %vm450 = vmor %vm448, %vm449
          %v451 = vsel %vm450, %v442, %v447
          %v452 = vrsqrt.pop %v427
          %v453 = vmul.f32 %v452, %v427
          %v454 = vmul.f32 %v453, %v452
          %v455 = vmul.f32 0.5, %v454
          %v456 = vsub.f32 1.5, %v455
          %v457 = vmul.f32 %v452, %v456
          %vm458 = vweird.f32 %v427
          %vm459 = vweird.f32 %v452
          %vm460 = vmor %vm458, %vm459
          %v461 = vsel %vm460, %v452, %v457
          %v462 = vrsqrt.pop %v428
          %v463 = vmul.f32 %v462, %v428
          %v464 = vmul.f32 %v463, %v462
          %v465 = vmul.f32 0.5, %v464
          %v466 = vsub.f32 1.5, %v465
          %v467 = vmul.f32 %v462, %v466
          %vm468 = vweird.f32 %v428
          %vm469 = vweird.f32 %v462
          %vm470 = vmor %vm468, %vm469
          %v471 = vsel %vm470, %v462, %v467
          %v472 = vrsqrt.pop %v429
          %v473 = vmul.f32 %v472, %v429
          %v474 = vmul.f32 %v473, %v472
          %v475 = vmul.f32 0.5, %v474
          %v476 = vsub.f32 1.5, %v475
          %v477 = vmul.f32 %v472, %v476
          %vm478 = vweird.f32 %v429
          %vm479 = vweird.f32 %v472
          %vm480 = vmor %vm478, %vm479
          %v481 = vsel %vm480, %v472, %v477
          %v482 = vrsqrt.pop %v430
          %v483 = vmul.f32 %v482, %v430
          %v484 = vmul.f32 %v483, %v482
          %v485 = vmul.f32 0.5, %v484
          %v486 = vsub.f32 1.5, %v485
          %v487 = vmul.f32 %v482, %v486
          %vm488 = vweird.f32 %v430
          %vm489 = vweird.f32 %v482
          %vm490 = vmor %vm488, %vm489
          %v491 = vsel %vm490, %v482, %v487
          %v492 = vrsqrt.pop %v431
          %v493 = vmul.f32 %v492, %v431
          %v494 = vmul.f32 %v493, %v492
          %v495 = vmul.f32 0.5, %v494
          %v496 = vsub.f32 1.5, %v495
          %v497 = vmul.f32 %v492, %v496
          %vm498 = vweird.f32 %v431
          %vm499 = vweird.f32 %v492
          %vm500 = vmor %vm498, %vm499
          %v501 = vsel %vm500, %v492, %v497
          %v502 = vrsqrt.pop %v432
          %v503 = vmul.f32 %v502, %v432
          %v504 = vmul.f32 %v503, %v502
          %v505 = vmul.f32 0.5, %v504
          %v506 = vsub.f32 1.5, %v505
          %v507 = vmul.f32 %v502, %v506
          %vm508 = vweird.f32 %v432
          %vm509 = vweird.f32 %v502
          %vm510 = vmor %vm508, %vm509
          %v511 = vsel %vm510, %v502, %v507
          %v512 = vrsqrt.pop %v433
          %v513 = vmul.f32 %v512, %v433
          %v514 = vmul.f32 %v513, %v512
          %v515 = vmul.f32 0.5, %v514
          %v516 = vsub.f32 1.5, %v515
          %v517 = vmul.f32 %v512, %v516
          %vm518 = vweird.f32 %v433
          %vm519 = vweird.f32 %v512
          %vm520 = vmor %vm518, %vm519
          %v521 = vsel %vm520, %v512, %v517
          %v522 = vrsqrt.pop %v434
          %v523 = vmul.f32 %v522, %v434
          %v524 = vmul.f32 %v523, %v522
          %v525 = vmul.f32 0.5, %v524
          %v526 = vsub.f32 1.5, %v525
          %v527 = vmul.f32 %v522, %v526
          %vm528 = vweird.f32 %v434
          %vm529 = vweird.f32 %v522
          %vm530 = vmor %vm528, %vm529
          %v531 = vsel %vm530, %v522, %v527
          %v532 = vrsqrt.pop %v435
          %v533 = vmul.f32 %v532, %v435
          %v534 = vmul.f32 %v533, %v532
          %v535 = vmul.f32 0.5, %v534
          %v536 = vsub.f32 1.5, %v535
          %v537 = vmul.f32 %v532, %v536
          %vm538 = vweird.f32 %v435
          %vm539 = vweird.f32 %v532
          %vm540 = vmor %vm538, %vm539
          %v541 = vsel %vm540, %v532, %v537
          %v542 = vrsqrt.pop %v436
          %v543 = vmul.f32 %v542, %v436
          %v544 = vmul.f32 %v543, %v542
          %v545 = vmul.f32 0.5, %v544
          %v546 = vsub.f32 1.5, %v545
          %v547 = vmul.f32 %v542, %v546
          %vm548 = vweird.f32 %v436
          %vm549 = vweird.f32 %v542
          %vm550 = vmor %vm548, %vm549
          %v551 = vsel %vm550, %v542, %v547
          %v552 = vrsqrt.pop %v437
          %v553 = vmul.f32 %v552, %v437
          %v554 = vmul.f32 %v553, %v552
          %v555 = vmul.f32 0.5, %v554
          %v556 = vsub.f32 1.5, %v555
          %v557 = vmul.f32 %v552, %v556
          %vm558 = vweird.f32 %v437
          %vm559 = vweird.f32 %v552
          %vm560 = vmor %vm558, %vm559
          %v561 = vsel %vm560, %v552, %v557
          %v562 = vrsqrt.pop %v438
          %v563 = vmul.f32 %v562, %v438
          %v564 = vmul.f32 %v563, %v562
          %v565 = vmul.f32 0.5, %v564
          %v566 = vsub.f32 1.5, %v565
          %v567 = vmul.f32 %v562, %v566
          %vm568 = vweird.f32 %v438
          %vm569 = vweird.f32 %v562
          %vm570 = vmor %vm568, %vm569
          %v571 = vsel %vm570, %v562, %v567
          %v572 = vrsqrt.pop %v439
          %v573 = vmul.f32 %v572, %v439
          %v574 = vmul.f32 %v573, %v572
          %v575 = vmul.f32 0.5, %v574
          %v576 = vsub.f32 1.5, %v575
          %v577 = vmul.f32 %v572, %v576
          %vm578 = vweird.f32 %v439
          %vm579 = vweird.f32 %v572
          %vm580 = vmor %vm578, %vm579
          %v581 = vsel %vm580, %v572, %v577
          %v582 = vrsqrt.pop %v440
          %v583 = vmul.f32 %v582, %v440
          %v584 = vmul.f32 %v583, %v582
          %v585 = vmul.f32 0.5, %v584
          %v586 = vsub.f32 1.5, %v585
          %v587 = vmul.f32 %v582, %v586
          %vm588 = vweird.f32 %v440
          %vm589 = vweird.f32 %v582
          %vm590 = vmor %vm588, %vm589
          %v591 = vsel %vm590, %v582, %v587
          %v592 = vrsqrt.pop %v441
          %v593 = vmul.f32 %v592, %v441
          %v594 = vmul.f32 %v593, %v592
          %v595 = vmul.f32 0.5, %v594
          %v596 = vsub.f32 1.5, %v595
          %v597 = vmul.f32 %v592, %v596
          %vm598 = vweird.f32 %v441
          %vm599 = vweird.f32 %v592
          %vm600 = vmor %vm598, %vm599
          %v601 = vsel %vm600, %v592, %v597
          %v602 = vand.u32 2147483647, %v451
          %v603 = vand.u32 2147483647, %v461
          %v604 = vand.u32 2147483647, %v471
          %v605 = vand.u32 2147483647, %v481
          %v606 = vand.u32 2147483647, %v491
          %v607 = vand.u32 2147483647, %v501
          %v608 = vand.u32 2147483647, %v511
          %v609 = vand.u32 2147483647, %v521
          %v610 = vand.u32 2147483647, %v531
          %v611 = vand.u32 2147483647, %v541
          %v612 = vand.u32 2147483647, %v551
          %v613 = vand.u32 2147483647, %v561
          %v614 = vand.u32 2147483647, %v571
          %v615 = vand.u32 2147483647, %v581
          %v616 = vand.u32 2147483647, %v591
          %v617 = vand.u32 2147483647, %v601
          %vm618 = vcmp.eq.f32.partialorder %v602, inf
          %vm619 = vcmp.eq.f32.partialorder %v603, inf
          %vm620 = vcmp.eq.f32.partialorder %v604, inf
          %vm621 = vcmp.eq.f32.partialorder %v605, inf
          %vm622 = vcmp.eq.f32.partialorder %v606, inf
          %vm623 = vcmp.eq.f32.partialorder %v607, inf
          %vm624 = vcmp.eq.f32.partialorder %v608, inf
          %vm625 = vcmp.eq.f32.partialorder %v609, inf
          %vm626 = vcmp.eq.f32.partialorder %v610, inf
          %vm627 = vcmp.eq.f32.partialorder %v611, inf
          %vm628 = vcmp.eq.f32.partialorder %v612, inf
          %vm629 = vcmp.eq.f32.partialorder %v613, inf
          %vm630 = vcmp.eq.f32.partialorder %v614, inf
          %vm631 = vcmp.eq.f32.partialorder %v615, inf
          %vm632 = vcmp.eq.f32.partialorder %v616, inf
          %vm633 = vcmp.eq.f32.partialorder %v617, inf
          %v634 = vsel %vm618, 0.0, %v451
          %v635 = vsel %vm619, 0.0, %v461
          %v636 = vsel %vm620, 0.0, %v471
          %v637 = vsel %vm621, 0.0, %v481
          %v638 = vsel %vm622, 0.0, %v491
          %v639 = vsel %vm623, 0.0, %v501
          %v640 = vsel %vm624, 0.0, %v511
          %v641 = vsel %vm625, 0.0, %v521
          %v642 = vsel %vm626, 0.0, %v531
          %v643 = vsel %vm627, 0.0, %v541
          %v644 = vsel %vm628, 0.0, %v551
          %v645 = vsel %vm629, 0.0, %v561
          %v646 = vsel %vm630, 0.0, %v571
          %v647 = vsel %vm631, 0.0, %v581
          %v648 = vsel %vm632, 0.0, %v591
          %v649 = vsel %vm633, 0.0, %v601
          %650 = vst.msk [vmem:[%s303] sm:$0xff] %vm406, %v634
          %651 = vst.msk [vmem:[%s303 + $0x8] sm:$0xff] %vm406, %v635
          %652 = vst.msk [vmem:[%s303 + $0x10] sm:$0xff] %vm406, %v636
          %653 = vst.msk [vmem:[%s303 + $0x18] sm:$0xff] %vm406, %v637
          %654 = vst.msk [vmem:[%s303 + $0x20] sm:$0xff] %vm406, %v638
          %655 = vst.msk [vmem:[%s303 + $0x28] sm:$0xff] %vm406, %v639
          %656 = vst.msk [vmem:[%s303 + $0x30] sm:$0xff] %vm406, %v640
          %657 = vst.msk [vmem:[%s303 + $0x38] sm:$0xff] %vm406, %v641
          %658 = vst.msk [vmem:[%s303 + $0x40] sm:$0xff] %vm406, %v642
          %659 = vst.msk [vmem:[%s303 + $0x48] sm:$0xff] %vm406, %v643
          %660 = vst.msk [vmem:[%s303 + $0x50] sm:$0xff] %vm406, %v644
          %661 = vst.msk [vmem:[%s303 + $0x58] sm:$0xff] %vm406, %v645
          %662 = vst.msk [vmem:[%s303 + $0x60] sm:$0xff] %vm406, %v646
          %663 = vst.msk [vmem:[%s303 + $0x68] sm:$0xff] %vm406, %v647
          %664 = vst.msk [vmem:[%s303 + $0x70] sm:$0xff] %vm406, %v648
          %665 = vst.msk [vmem:[%s303 + $0x78] sm:$0xff] %vm406, %v649
          %v666 = vld [vmem:[%s292] sm:$0xff]
          %v667 = vld [vmem:[%s292 + $0x8] sm:$0xff]
          %v668 = vld [vmem:[%s292 + $0x10] sm:$0xff]
          %v669 = vld [vmem:[%s292 + $0x18] sm:$0xff]
          %v670 = vld [vmem:[%s292 + $0x20] sm:$0xff]
          %v671 = vld [vmem:[%s292 + $0x28] sm:$0xff]
          %v672 = vld [vmem:[%s292 + $0x30] sm:$0xff]
          %v673 = vld [vmem:[%s292 + $0x38] sm:$0xff]
          %v674 = vld [vmem:[%s292 + $0x40] sm:$0xff]
          %v675 = vld [vmem:[%s292 + $0x48] sm:$0xff]
          %v676 = vld [vmem:[%s292 + $0x50] sm:$0xff]
          %v677 = vld [vmem:[%s292 + $0x58] sm:$0xff]
          %v678 = vld [vmem:[%s292 + $0x60] sm:$0xff]
          %v679 = vld [vmem:[%s292 + $0x68] sm:$0xff]
          %v680 = vld [vmem:[%s292 + $0x70] sm:$0xff]
          %v681 = vld [vmem:[%s292 + $0x78] sm:$0xff]
          %v682 = vld [vmem:[%s2] sm:$0xff]
          %vm683 = vcmask 64512
          %v685 = vsel %vm683, %v666, 0
          %v688 = vsel %vm683, %v667, 0
          %v691 = vsel %vm683, %v668, 0
          %v694 = vsel %vm683, %v669, 0
          %v697 = vsel %vm683, %v670, 0
          %v700 = vsel %vm683, %v671, 0
          %v703 = vsel %vm683, %v672, 0
          %v706 = vsel %vm683, %v673, 0
          %v709 = vsel %vm683, %v674, 0
          %v712 = vsel %vm683, %v675, 0
          %v715 = vsel %vm683, %v676, 0
          %v718 = vsel %vm683, %v677, 0
          %v721 = vsel %vm683, %v678, 0
          %v724 = vsel %vm683, %v679, 0
          %v727 = vsel %vm683, %v680, 0
          %v730 = vsel %vm683, %v681, 0
          %732 = vmatpush.msra.mxu0 0.0
          %733 = vmatpush.msra.mxu0 0.0
          %734 = vmatpush.msra.mxu0 0.0
          %735 = vmatpush.msra.mxu0 0.0
          %736 = vmatpush.msra.mxu0 0.0
          %737 = vmatpush.msra.mxu0 0.0
          %738 = vmatpush.msra.mxu0 0.0
          %739 = vmatpush.msra.mxu0 0.0
          %740 = vmatpush.msra.mxu0 0.0
          %741 = vmatpush.msra.mxu0 0.0
          %742 = vmatpush.msra.mxu0 0.0
          %743 = vmatpush.msra.mxu0 0.0
          %744 = vmatpush.msra.mxu0 0.0
          %745 = vmatpush.msra.mxu0 0.0
          %746 = vmatpush.msra.mxu0 0.0
          %747 = vmatpush.msra.mxu0 %v682
          %748 = vmatmul.f32.gmra.mxu0 %v685
          %v749 = vpop.f32.mrf.mxu0
          %v750 = vadd.f32 0.0, %v749
          %751 = vmatmul.f32.gmra.mxu0 %v688
          %v752 = vpop.f32.mrf.mxu0
          %v753 = vadd.f32 0.0, %v752
          %754 = vmatmul.f32.gmra.mxu0 %v691
          %v755 = vpop.f32.mrf.mxu0
          %v756 = vadd.f32 0.0, %v755
          %757 = vmatmul.f32.gmra.mxu0 %v694
          %v758 = vpop.f32.mrf.mxu0
          %v759 = vadd.f32 0.0, %v758
          %760 = vmatmul.f32.gmra.mxu0 %v697
          %v761 = vpop.f32.mrf.mxu0
          %v762 = vadd.f32 0.0, %v761
          %763 = vmatmul.f32.gmra.mxu0 %v700
          %v764 = vpop.f32.mrf.mxu0
          %v765 = vadd.f32 0.0, %v764
          %766 = vmatmul.f32.gmra.mxu0 %v703
          %v767 = vpop.f32.mrf.mxu0
          %v768 = vadd.f32 0.0, %v767
          %769 = vmatmul.f32.gmra.mxu0 %v706
          %v770 = vpop.f32.mrf.mxu0
          %v771 = vadd.f32 0.0, %v770
          %772 = vmatmul.f32.gmra.mxu0 %v709
          %v773 = vpop.f32.mrf.mxu0
          %v774 = vadd.f32 0.0, %v773
          %775 = vmatmul.f32.gmra.mxu0 %v712
          %v776 = vpop.f32.mrf.mxu0
          %v777 = vadd.f32 0.0, %v776
          %778 = vmatmul.f32.gmra.mxu0 %v715
          %v779 = vpop.f32.mrf.mxu0
          %v780 = vadd.f32 0.0, %v779
          %781 = vmatmul.f32.gmra.mxu0 %v718
          %v782 = vpop.f32.mrf.mxu0
          %v783 = vadd.f32 0.0, %v782
          %784 = vmatmul.f32.gmra.mxu0 %v721
          %v785 = vpop.f32.mrf.mxu0
          %v786 = vadd.f32 0.0, %v785
          %787 = vmatmul.f32.gmra.mxu0 %v724
          %v788 = vpop.f32.mrf.mxu0
          %v789 = vadd.f32 0.0, %v788
          %790 = vmatmul.f32.gmra.mxu0 %v727
          %v791 = vpop.f32.mrf.mxu0
          %v792 = vadd.f32 0.0, %v791
          %793 = vmatmul.f32.gmra.mxu0 %v730
          %v794 = vpop.f32.mrf.mxu0
          %v795 = vadd.f32 0.0, %v794
          %796 = vdwg.mxu0
          %798 = vset.pattern.permute.xlu0 0
          %799 = vperm.xlu0 %798, %v634
          %v800 = vpop.permute.xlu0 %799
          %803 = vset.pattern.permute.xlu0 0
          %804 = vperm.xlu0 %803, %v635
          %v805 = vpop.permute.xlu0 %804
          %808 = vset.pattern.permute.xlu0 0
          %809 = vperm.xlu0 %808, %v636
          %v810 = vpop.permute.xlu0 %809
          %813 = vset.pattern.permute.xlu0 0
          %814 = vperm.xlu0 %813, %v637
          %v815 = vpop.permute.xlu0 %814
          %818 = vset.pattern.permute.xlu0 0
          %819 = vperm.xlu0 %818, %v638
          %v820 = vpop.permute.xlu0 %819
          %823 = vset.pattern.permute.xlu0 0
          %824 = vperm.xlu0 %823, %v639
          %v825 = vpop.permute.xlu0 %824
          %828 = vset.pattern.permute.xlu0 0
          %829 = vperm.xlu0 %828, %v640
          %v830 = vpop.permute.xlu0 %829
          %833 = vset.pattern.permute.xlu0 0
          %834 = vperm.xlu0 %833, %v641
          %v835 = vpop.permute.xlu0 %834
          %838 = vset.pattern.permute.xlu0 0
          %839 = vperm.xlu0 %838, %v642
          %v840 = vpop.permute.xlu0 %839
          %843 = vset.pattern.permute.xlu0 0
          %844 = vperm.xlu0 %843, %v643
          %v845 = vpop.permute.xlu0 %844
          %848 = vset.pattern.permute.xlu0 0
          %849 = vperm.xlu0 %848, %v644
          %v850 = vpop.permute.xlu0 %849
          %853 = vset.pattern.permute.xlu0 0
          %854 = vperm.xlu0 %853, %v645
          %v855 = vpop.permute.xlu0 %854
          %858 = vset.pattern.permute.xlu0 0
          %859 = vperm.xlu0 %858, %v646
          %v860 = vpop.permute.xlu0 %859
          %863 = vset.pattern.permute.xlu0 0
          %864 = vperm.xlu0 %863, %v647
          %v865 = vpop.permute.xlu0 %864
          %868 = vset.pattern.permute.xlu0 0
          %869 = vperm.xlu0 %868, %v648
          %v870 = vpop.permute.xlu0 %869
          %873 = vset.pattern.permute.xlu0 0
          %874 = vperm.xlu0 %873, %v649
          %v875 = vpop.permute.xlu0 %874
          %v877 = vmul.f32 %v800, %v750
          %v878 = vmul.f32 %v805, %v753
          %v879 = vmul.f32 %v810, %v756
          %v880 = vmul.f32 %v815, %v759
          %v881 = vmul.f32 %v820, %v762
          %v882 = vmul.f32 %v825, %v765
          %v883 = vmul.f32 %v830, %v768
          %v884 = vmul.f32 %v835, %v771
          %v885 = vmul.f32 %v840, %v774
          %v886 = vmul.f32 %v845, %v777
          %v887 = vmul.f32 %v850, %v780
          %v888 = vmul.f32 %v855, %v783
          %v889 = vmul.f32 %v860, %v786
          %v890 = vmul.f32 %v865, %v789
          %v891 = vmul.f32 %v870, %v792
          %v892 = vmul.f32 %v875, %v795
          %893 = vst [vmem:[%s259] sm:$0xff] %v877
          %894 = vst [vmem:[%s259 + $0x8] sm:$0xff] %v878
          %895 = vst [vmem:[%s259 + $0x10] sm:$0xff] %v879
          %896 = vst [vmem:[%s259 + $0x18] sm:$0xff] %v880
          %897 = vst [vmem:[%s259 + $0x20] sm:$0xff] %v881
          %898 = vst [vmem:[%s259 + $0x28] sm:$0xff] %v882
          %899 = vst [vmem:[%s259 + $0x30] sm:$0xff] %v883
          %900 = vst [vmem:[%s259 + $0x38] sm:$0xff] %v884
          %901 = vst [vmem:[%s259 + $0x40] sm:$0xff] %v885
          %902 = vst [vmem:[%s259 + $0x48] sm:$0xff] %v886
          %903 = vst [vmem:[%s259 + $0x50] sm:$0xff] %v887
          %904 = vst [vmem:[%s259 + $0x58] sm:$0xff] %v888
          %905 = vst [vmem:[%s259 + $0x60] sm:$0xff] %v889
          %906 = vst [vmem:[%s259 + $0x68] sm:$0xff] %v890
          %907 = vst [vmem:[%s259 + $0x70] sm:$0xff] %v891
          %908 = vst [vmem:[%s259 + $0x78] sm:$0xff] %v892
        $region40: #{tpu_custom_call.1} parent=31 // pred_fallthru
          _
        %s909 = sand.u32 %s127, 1
        %s910 = scalar_lea.sflag [#allocation4], %s909
        %s911 = sand.u32 %s127, 1
        %s912 = smul.addr %s911, 128
        %s913 = scalar_lea.vmem [#allocation3], %s912
        %s914 = smul.u32 16, %s25
        %p915 = scmp.lt.s32.totalorder %s24, 1
        %s916 = scalar_select %p915, %s24, 1
        %p917 = scmp.lt.s32.totalorder %s914, 15
        %s918 = scalar_select %p917, %s914, 15
        %s919 = smul.addr %s916, 16
        %s920 = sadd.s32 %s918, %s919
        %s921 = smul.addr %s920, 8
        %s922 = scalar_lea.vmem %s4, %s921
        // Predicated region
        $region41: #{tpu_custom_call.1} parent=31 // pred_check
          %p923 = pneg %p137
        $region42: #{tpu_custom_call.1} parent=31 // pred_check_branch
          %925 = sbr.rel (%p923) target = $region44
        $region43: #{tpu_custom_call.1} parent=31 // pred_region
          %s926 = smul.u32 16, %s25
          %928 = vsyncadd %s910, 0
          %s929 = smul.addr %s24, 16
          %s930 = sadd.s32 %s926, %s929
          %s931 = smul.addr %s930, 8
          %s932 = scalar_lea.hbm %s3, %s931
          %s933 = sshll.u32 %s913, 4
          %s934 = int_to_ptr.vmem [resolvable:$true] %s933
          %s935 = sshll.u32 %s932, 4
          %s936 = int_to_ptr.hbm [resolvable:$true] %s935
          %941 = dma.vmem_to_hbm [thread:$0]  %s934, 2048, %s936, %s910, 128, 128, 8
        $region44: #{tpu_custom_call.1} parent=31 // pred_fallthru
          _
        // Predicated region
        $region45: #{tpu_custom_call.1} parent=31 // pred_check
          %p942 = pneg %p165
        $region46: #{tpu_custom_call.1} parent=31 // pred_check_branch
          %944 = sbr.rel (%p942) target = $region48
        $region47: #{tpu_custom_call.1} parent=31 // pred_region
          %s945 = smul.u32 16, %s25
        $region48: #{tpu_custom_call.1} parent=31 // pred_fallthru
          _
      $region32: #{tpu_custom_call.1} parent=5 // pred_fallthru
        _
      %p946 = scmp.le.s32.totalorder 2, %s14
      // Predicated region
      $region49: #{tpu_custom_call.1} parent=5 // pred_check
        %p947 = pneg %p946
      $region50: #{tpu_custom_call.1} parent=5 // pred_check_branch
        %949 = sbr.rel (%p947) target = $region52
      $region51: #{tpu_custom_call.1} parent=5 // pred_region
        %s950 = ssub.s32 %s14, 2
        // Predicated region
        $region53: #{tpu_custom_call.1} parent=51 // pred_check
          %p951 = pneg %p143
        $region54: #{tpu_custom_call.1} parent=51 // pred_check_branch
          %953 = sbr.rel (%p951) target = $region56
        $region55: #{tpu_custom_call.1} parent=51 // pred_region
          %s954 = sand.u32 %s128, 1
          %s955 = scalar_lea.sflag [#allocation4], %s954
          %s956 = sand.u32 %s128, 1
          %s957 = smul.addr %s956, 128
          %s958 = scalar_lea.vmem [#allocation3], %s957
          %960 = dma.done %s955, 2048
        $region56: #{tpu_custom_call.1} parent=51 // pred_fallthru
          _
        // Predicated region
        $region57: #{tpu_custom_call.1} parent=51 // pred_check
          %p961 = pneg %p171
        $region58: #{tpu_custom_call.1} parent=51 // pred_check_branch
          %963 = sbr.rel (%p961) target = $region60
        $region59: #{tpu_custom_call.1} parent=51 // pred_region
          %s964 = smul.u32 16, %s28
          %p965 = scmp.lt.s32.totalorder %s27, 1
          %s966 = scalar_select %p965, %s27, 1
          %p967 = scmp.lt.s32.totalorder %s964, 15
          %s968 = scalar_select %p967, %s964, 15
          %s969 = smul.addr %s966, 16
          %s970 = sadd.s32 %s968, %s969
          %s971 = smul.addr %s970, 8
          %s972 = scalar_lea.vmem %s4, %s971
        $region60: #{tpu_custom_call.1} parent=51 // pred_fallthru
          _
      $region52: #{tpu_custom_call.1} parent=5 // pred_fallthru
        _
    $region6: #{tpu_custom_call.1} parent=1 // loop_footer
      %s18 = sadd.s32 1, %s14
    $region7: #{tpu_custom_call.1} parent=1 // loop_footer_branch
      %13 = sbr.rel target = $region3
    $region8: #{tpu_custom_call.1} parent=1 // loop_exit
      _
    %973 = vsyncpa [#allocation4], 1
    %s974 = scalar_lea.sflag [#allocation4], 1
    %975 = vsyncpa %s974, 1

</llo_original>
